<compile_context>
chip_gen: v5e
topology: v5e:2x2
jax: 0.10.0
libtpu: 0.0.40
codegen_flags: <defaults>
</compile_context>

<pallas_src>
import math

import jax
import jax.numpy as jnp
from jax.experimental import pallas as pl
from jax.experimental.pallas import tpu as pltpu

_LANE = 128
_GAMMA_SUB = 8  # gamma kept in float32 -> 8-row sublane quantum


def _layer_scale_kernel(x_ref, g_ref, o_ref):
    # x_ref: (TR, TD) streaming tile; g_ref: (8, TD) resident f32 scale;
    # o_ref: (TR, TD). Multiply in f32, store in x's dtype.
    x = x_ref[...].astype(jnp.float32)
    g = g_ref[0:1, :]                     # (1, TD) -> broadcast over rows (VPU)
    o_ref[...] = (x * g).astype(o_ref.dtype)


def _sublane(itemsize):
    # 8 rows for f32, 16 for bf16, 32 for int8/fp8 (packed sublanes).
    return max(8, 32 // itemsize)


def _choose_tiles(n_rows, dim, itemsize,
                  target_bytes=3 << 20, vmem_budget=12 << 20):
    """Pick (row_tile, col_tile): sublane/lane aligned, ~target_bytes blocks."""
    sub = _sublane(itemsize)

    # Column (channel) tile: keep the full dim unless even the minimal
    # (sub, dim) block, double-buffered in+out, would blow scoped VMEM.
    td = dim
    if dim > _LANE and 4 * sub * dim * itemsize > vmem_budget:
        td = (vmem_budget // (4 * sub * itemsize)) // _LANE * _LANE
        td = max(_LANE, min(td, (dim // _LANE) * _LANE))

    # Row tile: ~target_bytes per (tr, td) block; 3 MiB x 4 buffers fits the
    # 16 MiB scoped-VMEM default (v5e) so the same policy is safe on all gens
    # and sits at >=85% of the measured mem-bound roofline.
    row_bytes = max(1, td * itemsize)
    tr = max(sub, (target_bytes // row_bytes) // sub * sub)

    # v7x megacore: give the "parallel" row axis >= ~4 steps for large inputs
    # so both TensorCores stream concurrently.
    if n_rows * dim * itemsize > (8 << 20):
        tr = min(tr, max(sub, (n_rows // 4) // sub * sub))

    if n_rows <= sub:
        tr = n_rows                       # full extent is always legal
    else:
        tr = min(tr, (n_rows // sub) * sub)
    return int(tr), int(td)


def _layer_scale_pallas(x2, gamma2, *, inplace=False):
    R, D = x2.shape
    itemsize = x2.dtype.itemsize
    tr, td = _choose_tiles(R, D, itemsize)
    grid = (pl.cdiv(R, tr), pl.cdiv(D, td))

    cost = pl.CostEstimate(
        flops=2 * R * D,  # mul + cast; the call is pure HBM streaming anyway
        transcendentals=0,
        bytes_accessed=2 * R * D * itemsize
        + gamma2.size * gamma2.dtype.itemsize,
    )

    return pl.pallas_call(
        _layer_scale_kernel,
        out_shape=jax.ShapeDtypeStruct((R, D), x2.dtype),
        grid_spec=pltpu.PrefetchScalarGridSpec(
            num_scalar_prefetch=0,
            grid=grid,
            in_specs=[
                pl.BlockSpec((tr, td), lambda i, j: (i, j)),          # stream x
                pl.BlockSpec((_GAMMA_SUB, td), lambda i, j: (0, j)),  # resident gamma
            ],
            out_specs=pl.BlockSpec((tr, td), lambda i, j: (i, j)),
        ),
        compiler_params=pltpu.CompilerParams(
            dimension_semantics=("parallel", "parallel"),
        ),
        cost_estimate=cost,
        input_output_aliases=({0: 0} if inplace else {}),
    )(x2, gamma2)


def layer_scale(x, gamma, *, inplace=False):
    """JAX/Pallas LayerScale.forward: y = x * gamma (gamma shape (dim,))."""
    D = int(x.shape[-1])
    assert gamma.shape == (D,), f"gamma shape {gamma.shape} != ({D},)"
    R = 1
    for s in x.shape[:-1]:
        R *= int(s)
    if R == 0 or D == 0:
        return x * gamma.astype(x.dtype)  # degenerate: nothing to stream

    g = gamma.astype(jnp.float32)  # compute in f32 (matches torch promotion)

    # Lane-densify narrow / odd channel dims: fold k consecutive rows into the
    # lane axis so the last dim becomes a multiple of 128 (full vreg occupancy,
    # unmasked stores). Valid only when R divides evenly into groups of k.
    Rw, Dw = R, D
    xw, gw = x.reshape(R, D), g
    if D % _LANE != 0:
        k = math.lcm(D, _LANE) // D
        if k > 1 and R % k == 0:
            Rw, Dw = R // k, k * D
            xw = x.reshape(Rw, Dw)
            gw = jnp.tile(g, k)

    # Pre-broadcast gamma to a full (8, Dw) f32 tile (native sublane quantum).
    g2 = jnp.broadcast_to(gw.reshape(1, Dw), (_GAMMA_SUB, Dw))

    out2 = _layer_scale_pallas(xw, g2, inplace=inplace)
    return out2.reshape(x.shape)


class LayerScale:
    """Minimal stateless wrapper mirroring the PyTorch module interface."""

    def __init__(self, dim: int, init_values: float = 1e-5,
                 inplace: bool = False, param_dtype=jnp.float32):
        # inplace maps to input/output buffer aliasing (JAX arrays are immutable).
        self.inplace = inplace
        self.gamma = init_values * jnp.ones((dim,), dtype=param_dtype)

    def __call__(self, x):
        return layer_scale(x, self.gamma, inplace=self.inplace)


if __name__ == "__main__":
    key = jax.random.PRNGKey(0)
    k1, k2, k3, k4, k5 = jax.random.split(key, 5)

    # 1) Transformer-like input from the audio model: (batch=2, seq=8, hidden=32).
    #    D=32 -> lane-folded to width 128 (k=4).
    x = jax.random.normal(k1, (2, 8, 32), dtype=jnp.float32)
    mod = LayerScale(dim=32, init_values=1e-5)
    y = jax.block_until_ready(mod(x))
    assert jnp.allclose(y, x * mod.gamma, atol=1e-6, rtol=1e-6), "fold mismatch"

    # 2) Ragged rows (R=150) with lane-aligned D=256: multi-step row grid and a
    #    masked last row block.
    x2 = jax.random.normal(k2, (3, 50, 256), dtype=jnp.float32)
    g2 = jax.random.normal(k3, (256,), dtype=jnp.float32)
    y2 = jax.block_until_ready(layer_scale(x2, g2))
    assert jnp.allclose(y2, x2 * g2, atol=1e-6, rtol=1e-6), "ragged mismatch"

    # 3) Fallback path (D=48, R=10 not divisible by k=8 -> no fold) with bf16
    #    activations and fp32 gamma (compute in f32, store bf16).
    x3 = jax.random.normal(k4, (10, 48), dtype=jnp.bfloat16)
    g3 = jax.random.normal(k5, (48,), dtype=jnp.float32)
    y3 = jax.block_until_ready(layer_scale(x3, g3))
    ref3 = (x3.astype(jnp.float32) * g3).astype(jnp.bfloat16)
    assert jnp.allclose(y3.astype(jnp.float32), ref3.astype(jnp.float32),
                        atol=1e-2, rtol=1e-2), "bf16 mismatch"

    # 4) inplace=True path (input/output aliasing, mirrors torch mul_).
    y4 = jax.block_until_ready(layer_scale(x, mod.gamma, inplace=True))
    assert jnp.allclose(y4, x * mod.gamma, atol=1e-6, rtol=1e-6), "alias mismatch"

    print("KERNEL_OK")
</pallas_src>

<mosaic_0001>
module attributes {stable_mosaic.version = 11 : i64} {
  func.func @_layer_scale_kernel(%arg0: i32, %arg1: i32, %arg2: memref<4x128xf32, #tpu.memory_space<vmem>>, %arg3: memref<8x128xf32, #tpu.memory_space<vmem>>, %arg4: memref<4x128xf32, #tpu.memory_space<vmem>>) attributes {dimension_semantics = [#tpu.dimension_semantics<parallel>, #tpu.dimension_semantics<parallel>], iteration_bounds = array<i64: 1, 1>, scalar_prefetch = 0 : i64, scratch_operands = 0 : i64, tpu.core_type = #tpu.core_type<tc>, window_params = [{transform_indices = @transform_0, window_bounds = array<i64: 4, 128>}, {transform_indices = @transform_1, window_bounds = array<i64: 8, 128>}, {transform_indices = @transform_2, window_bounds = array<i64: 4, 128>}]} {
    %c0 = arith.constant 0 : index
    %c0_0 = arith.constant 0 : index
    %0 = vector.load %arg2[%c0, %c0_0] : memref<4x128xf32, #tpu.memory_space<vmem>>, vector<4x128xf32>
    %c0_1 = arith.constant 0 : index
    %c0_2 = arith.constant 0 : index
    %1 = vector.load %arg3[%c0_1, %c0_2] : memref<8x128xf32, #tpu.memory_space<vmem>>, vector<1x128xf32>
    %2 = vector.broadcast %1 : vector<1x128xf32> to vector<4x128xf32>
    %3 = arith.mulf %0, %2 : vector<4x128xf32>
    %c0_3 = arith.constant 0 : index
    %c0_4 = arith.constant 0 : index
    %4 = vector.load %arg4[%c0_3, %c0_4] : memref<4x128xf32, #tpu.memory_space<vmem>>, vector<4x128xf32>
    tpu.vector_store %arg4[%c0_3, %c0_4], %3 {strides = array<i32>} : memref<4x128xf32, #tpu.memory_space<vmem>>, vector<4x128xf32>,
    return
  }
  func.func @transform_0(%arg0: i32, %arg1: i32) -> (i32, i32) {
    %c0_i32 = arith.constant 0 : i32
    return %arg0, %arg1 : i32, i32
  }
  func.func @transform_1(%arg0: i32, %arg1: i32) -> (i32, i32) {
    %c0_i32 = arith.constant 0 : i32
    %c0_i32_0 = arith.constant 0 : i32
    return %c0_i32, %arg1 : i32, i32
  }
  func.func @transform_2(%arg0: i32, %arg1: i32) -> (i32, i32) {
    %c0_i32 = arith.constant 0 : i32
    return %arg0, %arg1 : i32, i32
  }
}

</mosaic_0001>

<llo_original>
// kernel: tpu_custom_call.1
$region0: #{tpu_custom_call.1}
  #allocation0 [shape = 'u32[]', space=smem, size = 0x4, offset = 0x4, fixed_abs, tag = 'smem constant byte address 0x4 - core index']
  #allocation1 [shape = 'u32[72,128]{1,0:T(1,128)}', space=vmem, size = 0x9000, scoped, tag = 'internal scratch']
  %s0 = inlined_call_operand.hbm [shape: f32[4,128], index: 0, kind: input, shape index: {}]
  %s1 = inlined_call_operand.hbm [shape: f32[8,128], index: 1, kind: input, shape index: {}]
  %s2 = inlined_call_operand.hbm [shape: f32[4,128], index: 2, kind: output, shape index: {}]
  %s3 = sld [smem:[#allocation0]]
  $region26: #{tpu_custom_call.1} parent=0
    _
  %s5 = ssub.s32 1, %s3
  %s6 = scalar_select 0, %s5, %s3
  $region1: #{tpu_custom_call.1} parent=0
    #allocation2 [shape = 'u8[2048]{0}', space=vmem, size = 0x800, scoped, tag = 'input window, operand 0, single buffered']
    #allocation3 [shape = 's32[1]{0}', space=sflag, size = 0x4, scoped, tag = 'scoped memory for tpu_custom_call.1']
    #allocation4 [shape = 's32[1]{0}', space=sflag, size = 0x4, scoped, tag = 'scoped memory for tpu_custom_call.1']
    #allocation5 [shape = 'u8[4096]{0}', space=vmem, size = 0x1000, scoped, tag = 'input window, operand 1, single buffered']
    #allocation6 [shape = 's32[1]{0}', space=sflag, size = 0x4, scoped, tag = 'scoped memory for tpu_custom_call.1']
    #allocation7 [shape = 'u8[2048]{0}', space=vmem, size = 0x800, scoped, tag = 'output window, operand 0, single buffered']
    %7 = vsyncpa [#allocation3], 0
    %8 = vsyncpa [#allocation6], 0
    %9 = vsyncpa [#allocation4], 0
    // Predicated region
    $region2: #{tpu_custom_call.1} parent=1 // pred_check
      _
    $region3: #{tpu_custom_call.1} parent=1 // pred_check_branch
      %11 = sbr.rel (0) target = $region5
    $region4: #{tpu_custom_call.1} parent=1 // pred_region
      %13 = vsyncadd [#allocation3], 0
      %s15 = sshll.u32 %s0, 4
      %s16 = int_to_ptr.hbm [resolvable:$true] %s15
      %s17 = sshll.u32 [#allocation2], 4
      %s18 = int_to_ptr.vmem [resolvable:$true] %s17
      %20 = dma.hbm_to_vmem [thread:$0]  %s16, 64, %s18, [#allocation3]
    $region5: #{tpu_custom_call.1} parent=1 // pred_fallthru
      _
    // Predicated region
    $region6: #{tpu_custom_call.1} parent=1 // pred_check
      _
    $region7: #{tpu_custom_call.1} parent=1 // pred_check_branch
      %22 = sbr.rel (0) target = $region9
    $region8: #{tpu_custom_call.1} parent=1 // pred_region
      %24 = vsyncadd [#allocation6], 0
      %s26 = sshll.u32 %s1, 4
      %s27 = int_to_ptr.hbm [resolvable:$true] %s26
      %s28 = sshll.u32 [#allocation5], 4
      %s29 = int_to_ptr.vmem [resolvable:$true] %s28
      %31 = dma.hbm_to_vmem [thread:$0]  %s27, 128, %s29, [#allocation6]
    $region9: #{tpu_custom_call.1} parent=1 // pred_fallthru
      _
    // Predicated region
    $region10: #{tpu_custom_call.1} parent=1 // pred_check
      _
    $region11: #{tpu_custom_call.1} parent=1 // pred_check_branch
      %33 = sbr.rel (0) target = $region13
    $region12: #{tpu_custom_call.1} parent=1 // pred_region
      %35 = dma.done [#allocation3], 64
    $region13: #{tpu_custom_call.1} parent=1 // pred_fallthru
      _
    // Predicated region
    $region14: #{tpu_custom_call.1} parent=1 // pred_check
      _
    $region15: #{tpu_custom_call.1} parent=1 // pred_check_branch
      %37 = sbr.rel (0) target = $region17
    $region16: #{tpu_custom_call.1} parent=1 // pred_region
      %39 = dma.done [#allocation6], 128
    $region17: #{tpu_custom_call.1} parent=1 // pred_fallthru
      _
    %v40 = vld [vmem:[#allocation2] sm:$0xf]
    %v41 = vld [vmem:[#allocation5] sm:$0x1]
    %v42 = vperm.slane %v41, 0
    %v43 = vmul.f32 %v40, %v42
    %44 = vst [vmem:[#allocation7] sm:$0xf] %v43
    // Predicated region
    $region18: #{tpu_custom_call.1} parent=1 // pred_check
      _
    $region19: #{tpu_custom_call.1} parent=1 // pred_check_branch
      %46 = sbr.rel (0) target = $region21
    $region20: #{tpu_custom_call.1} parent=1 // pred_region
      %48 = vsyncadd [#allocation4], 0
      %s50 = sshll.u32 [#allocation7], 4
      %s51 = int_to_ptr.vmem [resolvable:$true] %s50
      %s52 = sshll.u32 %s2, 4
      %s53 = int_to_ptr.hbm [resolvable:$true] %s52
      %55 = dma.vmem_to_hbm [thread:$0]  %s51, 64, %s53, [#allocation4]
    $region21: #{tpu_custom_call.1} parent=1 // pred_fallthru
      _
    // Predicated region
    $region22: #{tpu_custom_call.1} parent=1 // pred_check
      _
    $region23: #{tpu_custom_call.1} parent=1 // pred_check_branch
      %57 = sbr.rel (0) target = $region25
    $region24: #{tpu_custom_call.1} parent=1 // pred_region
      %59 = dma.done [#allocation4], 64
    $region25: #{tpu_custom_call.1} parent=1 // pred_fallthru
      _
    %60 = vsyncpa [#allocation3], 1
    %61 = vsyncpa [#allocation6], 1
    %62 = vsyncpa [#allocation4], 1

</llo_original>
